<compile_context>
chip_gen: v6e
topology: v6e:2x2x1
jax: 0.10.0
libtpu: 0.0.40
codegen_flags: <defaults>
</compile_context>

<pallas_src>
import functools

import jax
import jax.numpy as jnp
from jax.experimental import pallas as pl
from jax.experimental.pallas import tpu as pltpu

_LANE = 128
_SUBLANE = 8
_BN_EPS = 1e-5
_LEAKY_SLOPE = 0.01


def _round_up(x, m):
    return (x + m - 1) // m * m


# ----------------------------------------------------------------------------
# Pass 1: per-tile partial BatchNorm statistics of hc = x @ W1 (bias excluded,
# it cancels inside BatchNorm -- see wrapper).  Each grid step writes its own
# (2, H_pad) slab, so the grid axis is fully parallel (megacore-friendly).
# Zero-padded batch rows give hc == 0 and contribute nothing, so no masking.
# ----------------------------------------------------------------------------
def _fc1_stats_kernel(x_ref, w1_ref, stats_ref):
    hc = jnp.dot(x_ref[...], w1_ref[...], preferred_element_type=jnp.float32)
    stats_ref[0:1, :] = jnp.sum(hc, axis=0, keepdims=True)
    stats_ref[1:2, :] = jnp.sum(hc * hc, axis=0, keepdims=True)


# ----------------------------------------------------------------------------
# Pass 2: recompute hc = x @ W1 (avoids the h HBM round-trip), apply the
# folded BatchNorm affine (scale/shift precomputed in the wrapper), LeakyReLU,
# then the hid -> 1 projection as a lane reduction instead of a padded matmul.
# ----------------------------------------------------------------------------
def _bn_act_fc2_kernel(x_ref, w1_ref, scale_ref, shift_ref, w2_ref, b2_ref,
                       o_ref):
    hc = jnp.dot(x_ref[...], w1_ref[...], preferred_element_type=jnp.float32)
    hn = hc * scale_ref[...] + shift_ref[...]
    act = jnp.maximum(hn, _LEAKY_SLOPE * hn)             # LeakyReLU(0.01)
    y = jnp.sum(act * w2_ref[...], axis=-1, keepdims=True) + b2_ref[...]
    o_ref[...] = y.astype(o_ref.dtype)


# ----------------------------------------------------------------------------
# Wrapper
# ----------------------------------------------------------------------------
def _relation_head_forward(x, w1, b1, gamma, beta, w2, b2, block_rows=1024):
    # Note: b1 (bias of the first Linear) is mathematically removed by the
    # batch-stat mean subtraction of BatchNorm1d, so it never affects the
    # forward output; it is accepted for interface parity but unused.
    del b1

    B, F = x.shape
    H = w1.shape[1]
    H_pad = _round_up(H, _LANE)

    grid_b = max(1, -(-B // block_rows))              # number of batch tiles
    tile_b = _round_up(-(-B // grid_b), _SUBLANE)     # balanced, multiple of 8
    B_pad = grid_b * tile_b

    f32 = jnp.float32
    x_p = jnp.pad(x.astype(f32), ((0, B_pad - B), (0, 0)))
    w1_p = jnp.pad(w1.astype(f32), ((0, 0), (0, H_pad - H)))
    g_p = jnp.pad(gamma.astype(f32), (0, H_pad - H))
    be_p = jnp.pad(beta.astype(f32), (0, H_pad - H))
    w2_p = jnp.pad(w2.astype(f32).reshape(1, -1), ((0, 0), (0, H_pad - H)))
    b2_p = b2.astype(f32).reshape(1, 1)

    # ---- pass 1: per-tile partial batch statistics (fully parallel grid) ----
    partials = pl.pallas_call(
        _fc1_stats_kernel,
        out_shape=jax.ShapeDtypeStruct((grid_b, 2, H_pad), f32),
        grid=(grid_b,),
        in_specs=[
            pl.BlockSpec((tile_b, F), lambda i: (i, 0)),
            pl.BlockSpec((F, H_pad), lambda i: (0, 0)),
        ],
        out_specs=pl.BlockSpec((pl.Squeezed(), 2, H_pad), lambda i: (i, 0, 0)),
        compiler_params=pltpu.CompilerParams(
            dimension_semantics=("parallel",)),
    )(x_p, w1_p)

    # Tiny cross-tile reduction + BN folding (128-wide XLA ops).
    # var = E[hc^2] - mean(hc)^2 with hc centered near 0 (bias excluded).
    stats = jnp.sum(partials, axis=0)                  # (2, H_pad)
    inv_n = 1.0 / B
    mean_c = stats[0] * inv_n
    var = jnp.maximum(stats[1] * inv_n - mean_c * mean_c, 0.0)
    scale = g_p * jax.lax.rsqrt(var + _BN_EPS)
    shift = be_p - mean_c * scale                      # absorbs b1 exactly
    scale_row = scale.reshape(1, H_pad)
    shift_row = shift.reshape(1, H_pad)

    # ---- pass 2: recompute FC1, BN affine, LeakyReLU, FC2 (parallel) --------
    out_p = pl.pallas_call(
        _bn_act_fc2_kernel,
        out_shape=jax.ShapeDtypeStruct((B_pad, 1), f32),
        grid=(grid_b,),
        in_specs=[
            pl.BlockSpec((tile_b, F), lambda i: (i, 0)),
            pl.BlockSpec((F, H_pad), lambda i: (0, 0)),
            pl.BlockSpec((1, H_pad), lambda i: (0, 0)),
            pl.BlockSpec((1, H_pad), lambda i: (0, 0)),
            pl.BlockSpec((1, H_pad), lambda i: (0, 0)),
            pl.BlockSpec((1, 1), lambda i: (0, 0)),
        ],
        out_specs=pl.BlockSpec((tile_b, 1), lambda i: (i, 0)),
        compiler_params=pltpu.CompilerParams(
            dimension_semantics=("parallel",)),
    )(x_p, w1_p, scale_row, shift_row, w2_p, b2_p)

    return out_p[:B, :]


relation_head_forward = jax.jit(_relation_head_forward,
                                static_argnames=("block_rows",))


# ----------------------------------------------------------------------------
# Deterministic parameters (mirrors relation_head.__init__ + _create_weights:
# Linear / BatchNorm1d weights ~ N(0, 0.05); Linear biases keep PyTorch's
# default U(-1/sqrt(fan_in), +1/sqrt(fan_in)); BN bias stays zero).
# Weights stored transposed ([in, out]) so the kernel does x @ W directly.
# ----------------------------------------------------------------------------
def make_params(key, feature_size, hidfeatsize):
    F = feature_size * 2
    H = hidfeatsize
    k1, k2, k3, k4, k5 = jax.random.split(key, 5)
    w1 = 0.05 * jax.random.normal(k1, (F, H), jnp.float32)
    b1 = jax.random.uniform(k2, (H,), jnp.float32, -1.0 / F ** 0.5, 1.0 / F ** 0.5)
    gamma = 0.05 * jax.random.normal(k3, (H,), jnp.float32)
    beta = jnp.zeros((H,), jnp.float32)
    w2 = 0.05 * jax.random.normal(k4, (H, 1), jnp.float32)
    b2 = jax.random.uniform(k5, (1,), jnp.float32, -1.0 / H ** 0.5, 1.0 / H ** 0.5)
    return {"w1": w1, "b1": b1, "gamma": gamma, "beta": beta, "w2": w2, "b2": b2}


# Pure-JAX reference for sanity checking (uses b1 explicitly; the kernel's
# analytic cancellation of b1 is verified by this comparison).
# TODO(synk): BatchNorm1d running_mean/running_var updates (training-state
# side effect) are not emitted; only the forward output is produced.
def _ref_forward(x, p):
    h = x @ p["w1"] + p["b1"][None, :]
    mean = h.mean(0, keepdims=True)
    var = ((h - mean) ** 2).mean(0, keepdims=True)
    hn = (h - mean) * jax.lax.rsqrt(var + _BN_EPS) * p["gamma"][None, :] + p["beta"][None, :]
    a = jnp.where(hn >= 0, hn, _LEAKY_SLOPE * hn)
    return a @ p["w2"] + p["b2"][None, :]


if __name__ == "__main__":
    key = jax.random.PRNGKey(0)
    k_x1, k_x2, k_p = jax.random.split(key, 3)

    feature_size, hidfeatsize = 32, 64     # module input dim = 2*feature_size = 64
    params = make_params(k_p, feature_size, hidfeatsize)

    # Case 1: small batch (single tile; batch 10 padded to 16 rows).
    x1 = jax.random.normal(k_x1, (10, 2 * feature_size), jnp.float32)
    out1 = jax.block_until_ready(relation_head_forward(
        x1, params["w1"], params["b1"], params["gamma"], params["beta"],
        params["w2"], params["b2"]))
    ref1 = _ref_forward(x1, params)
    assert out1.shape == (10, 1)
    assert jnp.allclose(out1, ref1, atol=1e-4, rtol=1e-4), float(jnp.abs(out1 - ref1).max())

    # Case 2: multi-tile grid (block_rows=8, batch 20 -> 3 tiles of 8 rows, 4
    # padded rows) exercising the cross-tile BatchNorm statistics combine.
    x2 = jax.random.normal(k_x2, (20, 2 * feature_size), jnp.float32)
    out2 = jax.block_until_ready(relation_head_forward(
        x2, params["w1"], params["b1"], params["gamma"], params["beta"],
        params["w2"], params["b2"], block_rows=8))
    ref2 = _ref_forward(x2, params)
    assert out2.shape == (20, 1)
    assert jnp.allclose(out2, ref2, atol=1e-4, rtol=1e-4), float(jnp.abs(out2 - ref2).max())

    print("KERNEL_OK")
</pallas_src>

<mosaic_0001>
module attributes {stable_mosaic.version = 11 : i64} {
  func.func @_fc1_stats_kernel(%arg0: i32, %arg1: memref<16x64xf32, #tpu.memory_space<vmem>>, %arg2: memref<64x128xf32, #tpu.memory_space<vmem>>, %arg3: memref<1x2x128xf32, #tpu.memory_space<vmem>>) attributes {dimension_semantics = [#tpu.dimension_semantics<parallel>], iteration_bounds = array<i64: 1>, scalar_prefetch = 0 : i64, scratch_operands = 0 : i64, tpu.core_type = #tpu.core_type<tc>, window_params = [{transform_indices = @transform_0, window_bounds = array<i64: 16, 64>}, {pipeline_mode = #tpu.pipeline_mode<synchronous>, transform_indices = @transform_1, window_bounds = array<i64: 64, 128>}, {transform_indices = @transform_2, window_bounds = array<i64: 1, 2, 128>}]} {
    %c0 = arith.constant 0 : index
    %c0_0 = arith.constant 0 : index
    %0 = vector.load %arg1[%c0, %c0_0] : memref<16x64xf32, #tpu.memory_space<vmem>>, vector<16x64xf32>
    %c0_1 = arith.constant 0 : index
    %c0_2 = arith.constant 0 : index
    %1 = vector.load %arg2[%c0_1, %c0_2] : memref<64x128xf32, #tpu.memory_space<vmem>>, vector<64x128xf32>
    %cst = arith.constant dense<0.000000e+00> : vector<16x128xf32>
    %2 = tpu.matmul %0, %1, %cst {dimension_numbers = #tpu.dot_dimension_numbers<[1], [0], [0], [1], [0, 0, 1, 1], [], []>} : vector<16x64xf32>, vector<64x128xf32>, vector<16x128xf32> -> vector<16x128xf32>
    %cst_3 = arith.constant dense<0.000000e+00> : vector<128xf32>
    %3 = vector.multi_reduction <add>, %2, %cst_3 [0] : vector<16x128xf32> to vector<128xf32>
    %4 = vector.shape_cast %3 : vector<128xf32> to vector<1x128xf32>
    %c0_4 = arith.constant 0 : index
    %c0_5 = arith.constant 0 : index
    %c0_6 = arith.constant 0 : index
    %5 = vector.load %arg3[%c0_4, %c0_5, %c0_6] : memref<1x2x128xf32, #tpu.memory_space<vmem>>, vector<1x1x128xf32>
    %6 = vector.shape_cast %5 : vector<1x1x128xf32> to vector<1x128xf32>
    %7 = vector.shape_cast %4 : vector<1x128xf32> to vector<1x1x128xf32>
    tpu.vector_store %arg3[%c0_4, %c0_5, %c0_6], %7 {strides = array<i32>} : memref<1x2x128xf32, #tpu.memory_space<vmem>>, vector<1x1x128xf32>,
    %8 = arith.mulf %2, %2 : vector<16x128xf32>
    %cst_7 = arith.constant dense<0.000000e+00> : vector<128xf32>
    %9 = vector.multi_reduction <add>, %8, %cst_7 [0] : vector<16x128xf32> to vector<128xf32>
    %10 = vector.shape_cast %9 : vector<128xf32> to vector<1x128xf32>
    %c0_8 = arith.constant 0 : index
    %c1 = arith.constant 1 : index
    %c0_9 = arith.constant 0 : index
    %11 = vector.load %arg3[%c0_8, %c1, %c0_9] : memref<1x2x128xf32, #tpu.memory_space<vmem>>, vector<1x1x128xf32>
    %12 = vector.shape_cast %11 : vector<1x1x128xf32> to vector<1x128xf32>
    %13 = vector.shape_cast %10 : vector<1x128xf32> to vector<1x1x128xf32>
    tpu.vector_store %arg3[%c0_8, %c1, %c0_9], %13 {strides = array<i32>} : memref<1x2x128xf32, #tpu.memory_space<vmem>>, vector<1x1x128xf32>,
    return
  }
  func.func @transform_0(%arg0: i32) -> (i32, i32) {
    %c0_i32 = arith.constant 0 : i32
    %c0_i32_0 = arith.constant 0 : i32
    return %arg0, %c0_i32 : i32, i32
  }
  func.func @transform_1(%arg0: i32) -> (i32, i32) {
    %c0_i32 = arith.constant 0 : i32
    %c0_i32_0 = arith.constant 0 : i32
    %c0_i32_1 = arith.constant 0 : i32
    return %c0_i32, %c0_i32_0 : i32, i32
  }
  func.func @transform_2(%arg0: i32) -> (i32, i32, i32) {
    %c0_i32 = arith.constant 0 : i32
    %c0_i32_0 = arith.constant 0 : i32
    %c0_i32_1 = arith.constant 0 : i32
    return %arg0, %c0_i32, %c0_i32_0 : i32, i32, i32
  }
}

module attributes {stable_mosaic.version = 11 : i64} {
  func.func @_bn_act_fc2_kernel(%arg0: i32, %arg1: memref<16x64xf32, #tpu.memory_space<vmem>>, %arg2: memref<64x128xf32, #tpu.memory_space<vmem>>, %arg3: memref<1x128xf32, #tpu.memory_space<vmem>>, %arg4: memref<1x128xf32, #tpu.memory_space<vmem>>, %arg5: memref<1x128xf32, #tpu.memory_space<vmem>>, %arg6: memref<1x1xf32, #tpu.memory_space<vmem>>, %arg7: memref<16x1xf32, #tpu.memory_space<vmem>>) attributes {dimension_semantics = [#tpu.dimension_semantics<parallel>], iteration_bounds = array<i64: 1>, scalar_prefetch = 0 : i64, scratch_operands = 0 : i64, tpu.core_type = #tpu.core_type<tc>, window_params = [{transform_indices = @transform_0, window_bounds = array<i64: 16, 64>}, {pipeline_mode = #tpu.pipeline_mode<synchronous>, transform_indices = @transform_1, window_bounds = array<i64: 64, 128>}, {pipeline_mode = #tpu.pipeline_mode<synchronous>, transform_indices = @transform_2, window_bounds = array<i64: 1, 128>}, {pipeline_mode = #tpu.pipeline_mode<synchronous>, transform_indices = @transform_3, window_bounds = array<i64: 1, 128>}, {pipeline_mode = #tpu.pipeline_mode<synchronous>, transform_indices = @transform_4, window_bounds = array<i64: 1, 128>}, {pipeline_mode = #tpu.pipeline_mode<synchronous>, transform_indices = @transform_5, window_bounds = array<i64: 1, 1>}, {transform_indices = @transform_6, window_bounds = array<i64: 16, 1>}]} {
    %c0 = arith.constant 0 : index
    %c0_0 = arith.constant 0 : index
    %0 = vector.load %arg1[%c0, %c0_0] : memref<16x64xf32, #tpu.memory_space<vmem>>, vector<16x64xf32>
    %c0_1 = arith.constant 0 : index
    %c0_2 = arith.constant 0 : index
    %1 = vector.load %arg2[%c0_1, %c0_2] : memref<64x128xf32, #tpu.memory_space<vmem>>, vector<64x128xf32>
    %cst = arith.constant dense<0.000000e+00> : vector<16x128xf32>
    %2 = tpu.matmul %0, %1, %cst {dimension_numbers = #tpu.dot_dimension_numbers<[1], [0], [0], [1], [0, 0, 1, 1], [], []>} : vector<16x64xf32>, vector<64x128xf32>, vector<16x128xf32> -> vector<16x128xf32>
    %c0_3 = arith.constant 0 : index
    %c0_4 = arith.constant 0 : index
    %3 = vector.load %arg3[%c0_3, %c0_4] : memref<1x128xf32, #tpu.memory_space<vmem>>, vector<1x128xf32>
    %4 = vector.broadcast %3 : vector<1x128xf32> to vector<16x128xf32>
    %5 = arith.mulf %2, %4 : vector<16x128xf32>
    %c0_5 = arith.constant 0 : index
    %c0_6 = arith.constant 0 : index
    %6 = vector.load %arg4[%c0_5, %c0_6] : memref<1x128xf32, #tpu.memory_space<vmem>>, vector<1x128xf32>
    %7 = vector.broadcast %6 : vector<1x128xf32> to vector<16x128xf32>
    %8 = arith.addf %5, %7 : vector<16x128xf32>
    %cst_7 = arith.constant 0.00999999977 : f32
    %9 = vector.broadcast %cst_7 : f32 to vector<16x128xf32>
    %10 = arith.mulf %9, %8 : vector<16x128xf32>
    %11 = arith.maximumf %8, %10 : vector<16x128xf32>
    %c0_8 = arith.constant 0 : index
    %c0_9 = arith.constant 0 : index
    %12 = vector.load %arg5[%c0_8, %c0_9] : memref<1x128xf32, #tpu.memory_space<vmem>>, vector<1x128xf32>
    %13 = vector.broadcast %12 : vector<1x128xf32> to vector<16x128xf32>
    %14 = arith.mulf %11, %13 : vector<16x128xf32>
    %cst_10 = arith.constant dense<0.000000e+00> : vector<16xf32>
    %15 = vector.multi_reduction <add>, %14, %cst_10 [1] : vector<16x128xf32> to vector<16xf32>
    %16 = vector.shape_cast %15 : vector<16xf32> to vector<16x1xf32>
    %c0_11 = arith.constant 0 : index
    %c0_12 = arith.constant 0 : index
    %17 = vector.load %arg6[%c0_11, %c0_12] : memref<1x1xf32, #tpu.memory_space<vmem>>, vector<1x1xf32>
    %18 = vector.broadcast %17 : vector<1x1xf32> to vector<16x1xf32>
    %19 = arith.addf %16, %18 : vector<16x1xf32>
    %c0_13 = arith.constant 0 : index
    %c0_14 = arith.constant 0 : index
    %20 = vector.load %arg7[%c0_13, %c0_14] : memref<16x1xf32, #tpu.memory_space<vmem>>, vector<16x1xf32>
    tpu.vector_store %arg7[%c0_13, %c0_14], %19 {strides = array<i32>} : memref<16x1xf32, #tpu.memory_space<vmem>>, vector<16x1xf32>,
    return
  }
  func.func @transform_0(%arg0: i32) -> (i32, i32) {
    %c0_i32 = arith.constant 0 : i32
    %c0_i32_0 = arith.constant 0 : i32
    return %arg0, %c0_i32 : i32, i32
  }
  func.func @transform_1(%arg0: i32) -> (i32, i32) {
    %c0_i32 = arith.constant 0 : i32
    %c0_i32_0 = arith.constant 0 : i32
    %c0_i32_1 = arith.constant 0 : i32
    return %c0_i32, %c0_i32_0 : i32, i32
  }
  func.func @transform_2(%arg0: i32) -> (i32, i32) {
    %c0_i32 = arith.constant 0 : i32
    %c0_i32_0 = arith.constant 0 : i32
    %c0_i32_1 = arith.constant 0 : i32
    return %c0_i32, %c0_i32_0 : i32, i32
  }
  func.func @transform_3(%arg0: i32) -> (i32, i32) {
    %c0_i32 = arith.constant 0 : i32
    %c0_i32_0 = arith.constant 0 : i32
    %c0_i32_1 = arith.constant 0 : i32
    return %c0_i32, %c0_i32_0 : i32, i32
  }
  func.func @transform_4(%arg0: i32) -> (i32, i32) {
    %c0_i32 = arith.constant 0 : i32
    %c0_i32_0 = arith.constant 0 : i32
    %c0_i32_1 = arith.constant 0 : i32
    return %c0_i32, %c0_i32_0 : i32, i32
  }
  func.func @transform_5(%arg0: i32) -> (i32, i32) {
    %c0_i32 = arith.constant 0 : i32
    %c0_i32_0 = arith.constant 0 : i32
    %c0_i32_1 = arith.constant 0 : i32
    return %c0_i32, %c0_i32_0 : i32, i32
  }
  func.func @transform_6(%arg0: i32) -> (i32, i32) {
    %c0_i32 = arith.constant 0 : i32
    %c0_i32_0 = arith.constant 0 : i32
    return %arg0, %c0_i32 : i32, i32
  }
}

</mosaic_0001>

<llo_original>
// kernel: _relation_head_forward.2
$region0: #{_relation_head_forward.2}
  #allocation0 [shape = 'u32[]', space=smem, size = 0x4, offset = 0x4, fixed_abs, tag = 'smem constant byte address 0x4 - core index']
  #allocation1 [shape = 'u32[144,128]{1,0:T(1,128)}', space=vmem, size = 0x12000, scoped, tag = 'internal scratch']
  %s0 = inlined_call_operand.vmem [shape: f32[16,64], index: 0, kind: input, shape index: {}]
  %s1 = inlined_call_operand.vmem [shape: f32[64,128], index: 1, kind: input, shape index: {}]
  %s2 = inlined_call_operand.vmem [shape: f32[1,2,128], index: 2, kind: output, shape index: {}]
  %s3 = sld [smem:[#allocation0]]
  $region18: #{_relation_head_forward.2} parent=0
    _
  %s5 = ssub.s32 1, %s3
  %s6 = scalar_select 0, %s5, %s3
  // Predicated region
  $region2: #{_relation_head_forward.2} parent=0 // pred_check
    _
  $region3: #{_relation_head_forward.2} parent=0 // pred_check_branch
    %8 = sbr.rel (0) target = $region5
  $region4: #{_relation_head_forward.2} parent=0 // pred_region
    _
  $region5: #{_relation_head_forward.2} parent=0 // pred_fallthru
    _
  // Predicated region
  $region6: #{_relation_head_forward.2} parent=0 // pred_check
    _
  $region7: #{_relation_head_forward.2} parent=0 // pred_check_branch
    %10 = sbr.rel (0) target = $region9
  $region8: #{_relation_head_forward.2} parent=0 // pred_region
    _
  $region9: #{_relation_head_forward.2} parent=0 // pred_fallthru
    _
  %v11 = vld [vmem:[%s0] sm:$0xff]
  %v12 = vld [vmem:[%s0 + $0x8] sm:$0xff]
  %v13 = vld [vmem:[%s1] sm:$0xff]
  %v14 = vld [vmem:[%s1 + $0x8] sm:$0xff]
  %v15 = vld [vmem:[%s1 + $0x10] sm:$0xff]
  %v16 = vld [vmem:[%s1 + $0x18] sm:$0xff]
  %v17 = vld [vmem:[%s1 + $0x20] sm:$0xff]
  %v18 = vld [vmem:[%s1 + $0x28] sm:$0xff]
  %v19 = vld [vmem:[%s1 + $0x30] sm:$0xff]
  %v20 = vld [vmem:[%s1 + $0x38] sm:$0xff]
  %vm21 = vcmask 523264
  %v23 = vsel %vm21, %v11, 0
  %v26 = vsel %vm21, %v12, 0
  %28 = vmatprep.subr.mxu0 0.0
  %29 = vmatpush1.msra.mxu0 0.0
  %30 = vmatprep.subr.mxu0 0.0
  %31 = vmatpush1.msra.mxu0 0.0
  %32 = vmatprep.subr.mxu0 0.0
  %33 = vmatpush1.msra.mxu0 0.0
  %34 = vmatprep.subr.mxu0 0.0
  %35 = vmatpush1.msra.mxu0 0.0
  %36 = vmatprep.subr.mxu0 0.0
  %37 = vmatpush1.msra.mxu0 0.0
  %38 = vmatprep.subr.mxu0 0.0
  %39 = vmatpush1.msra.mxu0 0.0
  %40 = vmatprep.subr.mxu0 0.0
  %41 = vmatpush1.msra.mxu0 0.0
  %42 = vmatprep.subr.mxu0 0.0
  %43 = vmatpush1.msra.mxu0 0.0
  %44 = vmatprep.subr.mxu0 0.0
  %45 = vmatpush1.msra.mxu0 %v20
  %46 = vmatprep.subr.mxu0 0.0
  %47 = vmatpush1.msra.mxu0 %v19
  %48 = vmatprep.subr.mxu0 0.0
  %49 = vmatpush1.msra.mxu0 %v18
  %50 = vmatprep.subr.mxu0 0.0
  %51 = vmatpush1.msra.mxu0 %v17
  %52 = vmatprep.subr.mxu0 0.0
  %53 = vmatpush1.msra.mxu0 %v16
  %54 = vmatprep.subr.mxu0 0.0
  %55 = vmatpush1.msra.mxu0 %v15
  %56 = vmatprep.subr.mxu0 0.0
  %57 = vmatpush1.msra.mxu0 %v14
  %58 = vmatprep.subr.mxu0 0.0
  %59 = vmatpush1.msra.mxu0 %v13
  %60 = vmatprep.subr.mxu0 0.0
  %61 = vmatpush2.msra.mxu0 0.0
  %62 = vmatprep.subr.mxu0 0.0
  %63 = vmatpush2.msra.mxu0 0.0
  %64 = vmatprep.subr.mxu0 0.0
  %65 = vmatpush2.msra.mxu0 0.0
  %66 = vmatprep.subr.mxu0 0.0
  %67 = vmatpush2.msra.mxu0 0.0
  %68 = vmatprep.subr.mxu0 0.0
  %69 = vmatpush2.msra.mxu0 0.0
  %70 = vmatprep.subr.mxu0 0.0
  %71 = vmatpush2.msra.mxu0 0.0
  %72 = vmatprep.subr.mxu0 0.0
  %73 = vmatpush2.msra.mxu0 0.0
  %74 = vmatprep.subr.mxu0 0.0
  %75 = vmatpush2.msra.mxu0 0.0
  %76 = vmatprep.subr.mxu0 0.0
  %77 = vmatpush2.msra.mxu0 0.0
  %78 = vmatprep.subr.mxu0 0.0
  %79 = vmatpush2.msra.mxu0 0.0
  %80 = vmatprep.subr.mxu0 0.0
  %81 = vmatpush2.msra.mxu0 0.0
  %82 = vmatprep.subr.mxu0 0.0
  %83 = vmatpush2.msra.mxu0 0.0
  %84 = vmatprep.subr.mxu0 0.0
  %85 = vmatpush2.msra.mxu0 0.0
  %86 = vmatprep.subr.mxu0 0.0
  %87 = vmatpush2.msra.mxu0 0.0
  %88 = vmatprep.subr.mxu0 0.0
  %89 = vmatpush2.msra.mxu0 0.0
  %90 = vmatprep.subr.mxu0 0.0
  %91 = vmatpush2.msra.mxu0 0.0
  %92 = vmatprep.mubr.f32.mxu0 0.0
  %93 = vmatmul.mubr.f32.gmra.mxu0 %v23
  %v94 = vpop.f32.mrf.mxu0
  %v95 = vadd.f32 0.0, %v94
  %v96 = vpop.f32.mrf.mxu0
  %97 = vmatprep.mubr.f32.mxu0 0.0
  %98 = vmatmul.mubr.f32.gmra.mxu0 %v26
  %v99 = vpop.f32.mrf.mxu0
  %v100 = vadd.f32 0.0, %v99
  %v101 = vpop.f32.mrf.mxu0
  %102 = vdwg.mxu0
  %v103 = vadd.f32 %v95, %v100
  %v104 = vrot.slane %v103, 4
  %v105 = vadd.f32 %v103, %v104
  %v106 = vrot.slane %v105, 2
  %v107 = vadd.f32 %v105, %v106
  %v108 = vrot.slane %v107, 1
  %v109 = vadd.f32 %v107, %v108
  %110 = vst [vmem:[%s2] sm:$0x1] %v109
  %v111 = vmul.f32 %v95, %v95
  %v112 = vmul.f32 %v100, %v100
  %v113 = vadd.f32 %v111, %v112
  %v114 = vrot.slane %v113, 4
  %v115 = vadd.f32 %v113, %v114
  %v116 = vrot.slane %v115, 2
  %v117 = vadd.f32 %v115, %v116
  %v118 = vrot.slane %v117, 1
  %v119 = vadd.f32 %v117, %v118
  %120 = vst [vmem:[%s2 + $0x1] sm:$0x1] %v119
  // Predicated region
  $region10: #{_relation_head_forward.2} parent=0 // pred_check
    _
  $region11: #{_relation_head_forward.2} parent=0 // pred_check_branch
    %122 = sbr.rel (0) target = $region13
  $region12: #{_relation_head_forward.2} parent=0 // pred_region
    _
  $region13: #{_relation_head_forward.2} parent=0 // pred_fallthru
    _
  // Predicated region
  $region14: #{_relation_head_forward.2} parent=0 // pred_check
    _
  $region15: #{_relation_head_forward.2} parent=0 // pred_check_branch
    %124 = sbr.rel (0) target = $region17
  $region16: #{_relation_head_forward.2} parent=0 // pred_region
    _
  $region17: #{_relation_head_forward.2} parent=0 // pred_fallthru
    _

// kernel: _relation_head_forward.3
$region0: #{_relation_head_forward.3}
  #allocation0 [shape = 'u32[]', space=smem, size = 0x4, offset = 0x4, fixed_abs, tag = 'smem constant byte address 0x4 - core index']
  #allocation1 [shape = 'u32[144,128]{1,0:T(1,128)}', space=vmem, size = 0x12000, scoped, tag = 'internal scratch']
  #allocation2 [shape = 'f32[1,1]{1,0:T(1,128)S(1)}', space=vmem, size = 0x200, scoped, tag = 'scoped memory for _relation_head_forward.3']
  %s0 = inlined_call_operand.vmem [shape: f32[16,64], index: 0, kind: input, shape index: {}]
  %s1 = inlined_call_operand.vmem [shape: f32[64,128], index: 1, kind: input, shape index: {}]
  %s2 = inlined_call_operand.vmem [shape: f32[1,128], index: 2, kind: input, shape index: {}]
  %s3 = inlined_call_operand.vmem [shape: f32[1,128], index: 3, kind: input, shape index: {}]
  %s4 = inlined_call_operand.vmem [shape: f32[1,128], index: 4, kind: input, shape index: {}]
  %s5 = inlined_call_operand.<no memory space> [shape: f32[1,1], index: 5, kind: input, shape index: {}]
  %s6 = inlined_call_operand.vmem [shape: f32[16,1], index: 6, kind: output, shape index: {}]
  %s7 = sld [smem:[#allocation0]]
  $region34: #{_relation_head_forward.3} parent=0
    _
  %s9 = ssub.s32 1, %s7
  %s10 = scalar_select 0, %s9, %s7
  %v11 = vstv %s5
  %12 = vst [vmem:[#allocation2] sm:$0x1] %v11
  // Predicated region
  $region2: #{_relation_head_forward.3} parent=0 // pred_check
    _
  $region3: #{_relation_head_forward.3} parent=0 // pred_check_branch
    %14 = sbr.rel (0) target = $region5
  $region4: #{_relation_head_forward.3} parent=0 // pred_region
    _
  $region5: #{_relation_head_forward.3} parent=0 // pred_fallthru
    _
  // Predicated region
  $region6: #{_relation_head_forward.3} parent=0 // pred_check
    _
  $region7: #{_relation_head_forward.3} parent=0 // pred_check_branch
    %16 = sbr.rel (0) target = $region9
  $region8: #{_relation_head_forward.3} parent=0 // pred_region
    _
  $region9: #{_relation_head_forward.3} parent=0 // pred_fallthru
    _
  // Predicated region
  $region10: #{_relation_head_forward.3} parent=0 // pred_check
    _
  $region11: #{_relation_head_forward.3} parent=0 // pred_check_branch
    %18 = sbr.rel (0) target = $region13
  $region12: #{_relation_head_forward.3} parent=0 // pred_region
    _
  $region13: #{_relation_head_forward.3} parent=0 // pred_fallthru
    _
  // Predicated region
  $region14: #{_relation_head_forward.3} parent=0 // pred_check
    _
  $region15: #{_relation_head_forward.3} parent=0 // pred_check_branch
    %20 = sbr.rel (0) target = $region17
  $region16: #{_relation_head_forward.3} parent=0 // pred_region
    _
  $region17: #{_relation_head_forward.3} parent=0 // pred_fallthru
    _
  // Predicated region
  $region18: #{_relation_head_forward.3} parent=0 // pred_check
    _
  $region19: #{_relation_head_forward.3} parent=0 // pred_check_branch
    %22 = sbr.rel (0) target = $region21
  $region20: #{_relation_head_forward.3} parent=0 // pred_region
    _
  $region21: #{_relation_head_forward.3} parent=0 // pred_fallthru
    _
  // Predicated region
  $region22: #{_relation_head_forward.3} parent=0 // pred_check
    _
  $region23: #{_relation_head_forward.3} parent=0 // pred_check_branch
    %24 = sbr.rel (0) target = $region25
  $region24: #{_relation_head_forward.3} parent=0 // pred_region
    _
  $region25: #{_relation_head_forward.3} parent=0 // pred_fallthru
    _
  %v25 = vld [vmem:[%s0] sm:$0xff]
  %v26 = vld [vmem:[%s0 + $0x8] sm:$0xff]
  %v27 = vld [vmem:[%s1] sm:$0xff]
  %v28 = vld [vmem:[%s1 + $0x8] sm:$0xff]
  %v29 = vld [vmem:[%s1 + $0x10] sm:$0xff]
  %v30 = vld [vmem:[%s1 + $0x18] sm:$0xff]
  %v31 = vld [vmem:[%s1 + $0x20] sm:$0xff]
  %v32 = vld [vmem:[%s1 + $0x28] sm:$0xff]
  %v33 = vld [vmem:[%s1 + $0x30] sm:$0xff]
  %v34 = vld [vmem:[%s1 + $0x38] sm:$0xff]
  %vm35 = vcmask 523264
  %v37 = vsel %vm35, %v25, 0
  %v40 = vsel %vm35, %v26, 0
  %42 = vmatprep.subr.mxu0 0.0
  %43 = vmatpush1.msra.mxu0 0.0
  %44 = vmatprep.subr.mxu0 0.0
  %45 = vmatpush1.msra.mxu0 0.0
  %46 = vmatprep.subr.mxu0 0.0
  %47 = vmatpush1.msra.mxu0 0.0
  %48 = vmatprep.subr.mxu0 0.0
  %49 = vmatpush1.msra.mxu0 0.0
  %50 = vmatprep.subr.mxu0 0.0
  %51 = vmatpush1.msra.mxu0 0.0
  %52 = vmatprep.subr.mxu0 0.0
  %53 = vmatpush1.msra.mxu0 0.0
  %54 = vmatprep.subr.mxu0 0.0
  %55 = vmatpush1.msra.mxu0 0.0
  %56 = vmatprep.subr.mxu0 0.0
  %57 = vmatpush1.msra.mxu0 0.0
  %58 = vmatprep.subr.mxu0 0.0
  %59 = vmatpush1.msra.mxu0 %v34
  %60 = vmatprep.subr.mxu0 0.0
  %61 = vmatpush1.msra.mxu0 %v33
  %62 = vmatprep.subr.mxu0 0.0
  %63 = vmatpush1.msra.mxu0 %v32
  %64 = vmatprep.subr.mxu0 0.0
  %65 = vmatpush1.msra.mxu0 %v31
  %66 = vmatprep.subr.mxu0 0.0
  %67 = vmatpush1.msra.mxu0 %v30
  %68 = vmatprep.subr.mxu0 0.0
  %69 = vmatpush1.msra.mxu0 %v29
  %70 = vmatprep.subr.mxu0 0.0
  %71 = vmatpush1.msra.mxu0 %v28
  %72 = vmatprep.subr.mxu0 0.0
  %73 = vmatpush1.msra.mxu0 %v27
  %74 = vmatprep.subr.mxu0 0.0
  %75 = vmatpush2.msra.mxu0 0.0
  %76 = vmatprep.subr.mxu0 0.0
  %77 = vmatpush2.msra.mxu0 0.0
  %78 = vmatprep.subr.mxu0 0.0
  %79 = vmatpush2.msra.mxu0 0.0
  %80 = vmatprep.subr.mxu0 0.0
  %81 = vmatpush2.msra.mxu0 0.0
  %82 = vmatprep.subr.mxu0 0.0
  %83 = vmatpush2.msra.mxu0 0.0
  %84 = vmatprep.subr.mxu0 0.0
  %85 = vmatpush2.msra.mxu0 0.0
  %86 = vmatprep.subr.mxu0 0.0
  %87 = vmatpush2.msra.mxu0 0.0
  %88 = vmatprep.subr.mxu0 0.0
  %89 = vmatpush2.msra.mxu0 0.0
  %90 = vmatprep.subr.mxu0 0.0
  %91 = vmatpush2.msra.mxu0 0.0
  %92 = vmatprep.subr.mxu0 0.0
  %93 = vmatpush2.msra.mxu0 0.0
  %94 = vmatprep.subr.mxu0 0.0
  %95 = vmatpush2.msra.mxu0 0.0
  %96 = vmatprep.subr.mxu0 0.0
  %97 = vmatpush2.msra.mxu0 0.0
  %98 = vmatprep.subr.mxu0 0.0
  %99 = vmatpush2.msra.mxu0 0.0
  %100 = vmatprep.subr.mxu0 0.0
  %101 = vmatpush2.msra.mxu0 0.0
  %102 = vmatprep.subr.mxu0 0.0
  %103 = vmatpush2.msra.mxu0 0.0
  %104 = vmatprep.subr.mxu0 0.0
  %105 = vmatpush2.msra.mxu0 0.0
  %106 = vmatprep.mubr.f32.mxu0 0.0
  %107 = vmatmul.mubr.f32.gmra.mxu0 %v37
  %v108 = vpop.f32.mrf.mxu0
  %v109 = vadd.f32 0.0, %v108
  %v110 = vpop.f32.mrf.mxu0
  %111 = vmatprep.mubr.f32.mxu0 0.0
  %112 = vmatmul.mubr.f32.gmra.mxu0 %v40
  %v113 = vpop.f32.mrf.mxu0
  %v114 = vadd.f32 0.0, %v113
  %v115 = vpop.f32.mrf.mxu0
  %116 = vdwg.mxu0
  %v117 = vld [vmem:[%s2] sm:$0x1]
  %v119 = vlaneseq
  %v120 = vshrl.u32 %v119, 7
  %v121 = vsub.s32 0, %v120
  %v122 = vrot.slane %v117, %v121
  %v124 = vmul.f32 %v109, %v122
  %v125 = vmul.f32 %v114, %v122
  %v126 = vld [vmem:[%s3] sm:$0x1]
  %v128 = vlaneseq
  %v129 = vshrl.u32 %v128, 7
  %v130 = vsub.s32 0, %v129
  %v131 = vrot.slane %v126, %v130
  %v133 = vadd.f32 %v124, %v131
  %v134 = vadd.f32 %v125, %v131
  %v135 = vmul.f32 %v133, 0.01
  %v136 = vmul.f32 %v134, 0.01
  %v137 = vmax.f32 %v133, %v135
  %v138 = vmax.f32 %v134, %v136
  %v139 = vld [vmem:[%s4] sm:$0x1]
  %v141 = vlaneseq
  %v142 = vshrl.u32 %v141, 7
  %v143 = vsub.s32 0, %v142
  %v144 = vrot.slane %v139, %v143
  %v146 = vmul.f32 %v137, %v144
  %v147 = vmul.f32 %v138, %v144
  %148 = vadd.xlane.f32.xlu0 %v146
  %v149 = vpop.xlane.xlu0 %148
  %150 = vadd.xlane.f32.xlu0 %v147
  %v151 = vpop.xlane.xlu0 %150
  %v152 = vld [vmem:[#allocation2] sm:$0x1]
  %v154 = vlaneseq
  %v155 = vshrl.u32 %v154, 7
  %v156 = vsub.s32 0, %v155
  %v157 = vrot.slane %v152, %v156
  %v159 = vadd.f32 %v149, %v157
  %v160 = vadd.f32 %v151, %v157
  %vm161 = vcmask 7168
  %162 = vst.msk [vmem:[%s6] sm:$0xff] %vm161, %v159
  %163 = vst.msk [vmem:[%s6 + $0x8] sm:$0xff] %vm161, %v160
  // Predicated region
  $region26: #{_relation_head_forward.3} parent=0 // pred_check
    _
  $region27: #{_relation_head_forward.3} parent=0 // pred_check_branch
    %165 = sbr.rel (0) target = $region29
  $region28: #{_relation_head_forward.3} parent=0 // pred_region
    _
  $region29: #{_relation_head_forward.3} parent=0 // pred_fallthru
    _
  // Predicated region
  $region30: #{_relation_head_forward.3} parent=0 // pred_check
    _
  $region31: #{_relation_head_forward.3} parent=0 // pred_check_branch
    %167 = sbr.rel (0) target = $region33
  $region32: #{_relation_head_forward.3} parent=0 // pred_region
    _
  $region33: #{_relation_head_forward.3} parent=0 // pred_fallthru
    _

</llo_original>
